<compile_context>
chip_gen: v5e
topology: v5e:2x2
jax: 0.10.0
libtpu: 0.0.40
codegen_flags: <defaults>
</compile_context>

<pallas_src>
import functools

import jax
import jax.numpy as jnp
import numpy as np
from jax import lax
from jax.experimental import pallas as pl
from jax.experimental.pallas import tpu as pltpu

NEG_SLOPE = 0.01  # nn.LeakyReLU() default negative_slope


def _leaky_relu(x):
    return jnp.where(x > 0, x, NEG_SLOPE * x)


def _conv_taps(a, w_ref, b, *, k_size, pad_l, compute_dtype):
    """a: (Ci, W) f32; w_ref: (K, Co, Ci); b: (Co, 1) f32 -> (Co, W) f32.

    Per-tap channel contraction on the MXU.  The tap shift is a static lane
    rotation (XLU slot, hides under MXU work); wrap-around only touches
    columns the caller never reads (outside the tile+pad region).
    """
    width = a.shape[-1]
    acc = None
    for k in range(k_size):                      # static, unrolled tap loop
        shift = (pad_l - k) % width
        a_k = pltpu.roll(a, shift=shift, axis=a.ndim - 1) if shift else a
        wk = w_ref[k]                            # (Co, Ci), static index
        t = jnp.dot(wk, a_k.astype(compute_dtype),
                    preferred_element_type=jnp.float32)   # f32 accumulation
        acc = t if acc is None else acc + t      # no explicit zeros init
    return acc + b


def _resblock_kernel(x_ref, halo_ref, w1_ref, b1_ref, w2_ref, b2_ref, o_ref,
                     *, k_size, pad_l, hl, hr, tile_l, seq_len, compute_dtype):
    j = pl.program_id(1)                          # L-tile index
    x_raw = x_ref[0]                              # (C, TILE_L)
    c = x_raw.shape[0]

    # Assemble [left halo | tile | right halo | lane pad] with a single concat.
    w_data = tile_l + hl + hr
    w_pad = ((w_data + 127) // 128) * 128         # keep the lane dim 128-aligned
    parts = []
    if hl + hr > 0:
        halo = halo_ref[0, 0]                     # (C, hl+hr)
        if hl > 0:
            parts.append(halo[:, :hl])
        parts.append(x_raw)
        if hr > 0:
            parts.append(halo[:, hl:hl + hr])
    else:
        parts.append(x_raw)
    if w_pad > w_data:
        parts.append(jnp.zeros((c, w_pad - w_data), x_raw.dtype))
    xb = parts[0] if len(parts) == 1 else jnp.concatenate(parts, axis=-1)

    a0 = _leaky_relu(xb.astype(jnp.float32))      # (C, W) f32, VPU
    y1 = _conv_taps(a0, w1_ref, b1_ref[...], k_size=k_size, pad_l=pad_l,
                    compute_dtype=compute_dtype)

    # conv2 zero-pads conv1's output outside [0, L): mask by global position.
    gp = j * tile_l - hl + lax.broadcasted_iota(jnp.int32, (1, w_pad), 1)
    y1 = jnp.where((gp >= 0) & (gp < seq_len), y1, 0.0)

    a1 = _leaky_relu(y1)
    y2 = _conv_taps(a1, w2_ref, b2_ref[...], k_size=k_size, pad_l=pad_l,
                    compute_dtype=compute_dtype)

    # Extract the TILE_L center columns: one rotation, then an aligned slice.
    if hl > 0:
        y2 = pltpu.roll(y2, shift=(w_pad - hl) % w_pad, axis=y2.ndim - 1)
    y2c = y2[:, :tile_l]

    o_ref[0] = (x_raw.astype(jnp.float32) + y2c).astype(o_ref.dtype)


def _pick_tile_l(length):
    """Lane-dense L tile: multiple of 128, sized to fit VMEM on v5e/v6e/v7x."""
    if length <= 1024:
        return ((max(length, 1) + 127) // 128) * 128
    return 512


def resblock_forward(x, w1, b1, w2, b2, *, tile_l=None):
    """x: (N, C, L); w*: (C, C, K); b*: (C,). Returns (N, C, L)."""
    n, c, length = x.shape
    k = w1.shape[-1]
    # PyTorch padding='same' (stride=1, dilation=1): left=(K-1)//2, right=rest.
    pad_l = (k - 1) // 2
    pad_r = (k - 1) - pad_l
    hl, hr = 2 * pad_l, 2 * pad_r            # halo for two stacked 'same' convs

    if tile_l is None:
        tile_l = _pick_tile_l(length)
    num_tiles = -(-length // tile_l)
    l_round = num_tiles * tile_l

    # bf16 MXU operands for realistic channel counts (bf16-native MXU); keep
    # f32 for tiny C where the matmul is MXU-padding-bound anyway.
    compute_dtype = jnp.bfloat16 if c >= 128 else jnp.float32
    # TODO(synk): for very small C (<~64) a VPU multiply-accumulate / im2col
    # (Co, Ci*K)@(Ci*K, TL) formulation would beat per-tap MXU matmuls.

    # Center tiles (residual + conv input), padded to a whole number of tiles.
    x_tiles = jnp.pad(x, ((0, 0), (0, 0), (0, l_round - length)))

    # Per-tile halo columns (tiny: 2*(K-1) per tile), gathered once outside.
    if hl + hr > 0:
        x_ext = jnp.pad(x, ((0, 0), (0, 0), (hl, hr + l_round - length)))
        starts = np.arange(num_tiles)[:, None] * tile_l
        col_idx = np.concatenate(
            [starts + np.arange(hl)[None, :],
             starts + (hl + tile_l) + np.arange(hr)[None, :]], axis=1)
        halos = jnp.transpose(x_ext[:, :, col_idx], (0, 2, 1, 3))
    else:
        halos = jnp.zeros((n, num_tiles, c, 1), x.dtype)
    halo_w = halos.shape[-1]

    # Weights as (K, Co, Ci) so K never lands on the (padded) lane dim; they
    # stay VMEM-resident across all grid steps via a constant index_map.
    w1t = jnp.transpose(w1, (2, 0, 1)).astype(compute_dtype)
    w2t = jnp.transpose(w2, (2, 0, 1)).astype(compute_dtype)
    b1r = b1.reshape(c, 1).astype(jnp.float32)
    b2r = b2.reshape(c, 1).astype(jnp.float32)

    kern = functools.partial(
        _resblock_kernel, k_size=k, pad_l=pad_l, hl=hl, hr=hr,
        tile_l=tile_l, seq_len=length, compute_dtype=compute_dtype)

    flops = 2 * (2 * n * l_round * c * c * k)           # two convs, 2 flop/MAC
    bytes_accessed = (
        (x_tiles.size + halos.size + n * c * l_round) * x.dtype.itemsize
        + (w1t.size + w2t.size) * w1t.dtype.itemsize
        + (b1r.size + b2r.size) * 4)

    out = pl.pallas_call(
        kern,
        out_shape=jax.ShapeDtypeStruct((n, c, l_round), x.dtype),
        grid=(n, num_tiles),
        in_specs=[
            pl.BlockSpec((1, c, tile_l), lambda i, j: (i, 0, j)),        # x tile
            pl.BlockSpec((1, 1, c, halo_w), lambda i, j: (i, j, 0, 0)),  # halo
            pl.BlockSpec((k, c, c), lambda i, j: (0, 0, 0)),             # w1 (resident)
            pl.BlockSpec((c, 1), lambda i, j: (0, 0)),                   # b1
            pl.BlockSpec((k, c, c), lambda i, j: (0, 0, 0)),             # w2 (resident)
            pl.BlockSpec((c, 1), lambda i, j: (0, 0)),                   # b2
        ],
        out_specs=pl.BlockSpec((1, c, tile_l), lambda i, j: (i, 0, j)),
        compiler_params=pltpu.CompilerParams(
            dimension_semantics=("parallel", "parallel"),  # both TCs on v7x
            vmem_limit_bytes=32 * 1024 * 1024),
        cost_estimate=pl.CostEstimate(
            flops=flops, transcendentals=0, bytes_accessed=bytes_accessed),
    )(x_tiles, halos, w1t, b1r, w2t, b2r)

    return out[:, :, :length] if l_round != length else out


if __name__ == "__main__":
    def conv_ref(v, w, b):
        y = lax.conv_general_dilated(
            v, w, window_strides=(1,), padding="SAME",
            dimension_numbers=("NCH", "OIH", "NCH"))
        return y + b.reshape(1, -1, 1)

    def reference(x, w1, b1, w2, b2):
        return x + conv_ref(_leaky_relu(conv_ref(_leaky_relu(x), w1, b1)),
                            w2, b2)

    def make_params(key, n, c, l, k):
        kx, k1, k2, k3, k4 = jax.random.split(key, 5)
        x = jax.random.normal(kx, (n, c, l), dtype=jnp.float32)
        bound = 1.0 / (c * k) ** 0.5
        w1 = jax.random.uniform(k1, (c, c, k), jnp.float32, -bound, bound)
        b1 = jax.random.uniform(k2, (c,), jnp.float32, -bound, bound)
        w2 = jax.random.uniform(k3, (c, c, k), jnp.float32, -bound, bound)
        b2 = jax.random.uniform(k4, (c,), jnp.float32, -bound, bound)
        return x, w1, b1, w2, b2

    key = jax.random.PRNGKey(0)

    # Primary small case (matches the module spec: batch=2, input_dim=4,
    # seq_len=16, kernel_size=3).
    N, C, L, K = 2, 4, 16, 3
    x, w1, b1, w2, b2 = make_params(key, N, C, L, K)
    out = jax.block_until_ready(resblock_forward(x, w1, b1, w2, b2))
    ref = reference(x, w1, b1, w2, b2)
    assert out.shape == (N, C, L)
    assert jnp.allclose(out, ref, atol=1e-5, rtol=1e-5)

    # Multi-tile case: forces several L tiles so the halo / boundary-mask
    # path across tile edges is exercised too.
    N2, C2, L2, K2 = 2, 8, 300, 3
    x2, w1b, b1b, w2b, b2b = make_params(jax.random.PRNGKey(1), N2, C2, L2, K2)
    out2 = jax.block_until_ready(
        resblock_forward(x2, w1b, b1b, w2b, b2b, tile_l=128))
    ref2 = reference(x2, w1b, b1b, w2b, b2b)
    assert out2.shape == (N2, C2, L2)
    assert jnp.allclose(out2, ref2, atol=1e-5, rtol=1e-5)

    print("KERNEL_OK")
</pallas_src>

<mosaic_0001>
module attributes {stable_mosaic.version = 11 : i64} {
  func.func @_resblock_kernel(%arg0: i32, %arg1: i32, %arg2: memref<1x4x128xf32, #tpu.memory_space<vmem>>, %arg3: memref<1x1x4x4xf32, #tpu.memory_space<vmem>>, %arg4: memref<3x4x4xf32, #tpu.memory_space<vmem>>, %arg5: memref<4x1xf32, #tpu.memory_space<vmem>>, %arg6: memref<3x4x4xf32, #tpu.memory_space<vmem>>, %arg7: memref<4x1xf32, #tpu.memory_space<vmem>>, %arg8: memref<1x4x128xf32, #tpu.memory_space<vmem>>) attributes {dimension_semantics = [#tpu.dimension_semantics<parallel>, #tpu.dimension_semantics<parallel>], iteration_bounds = array<i64: 2, 1>, scalar_prefetch = 0 : i64, scratch_operands = 0 : i64, tpu.core_type = #tpu.core_type<tc>, window_params = [{transform_indices = @transform_0, window_bounds = array<i64: 1, 4, 128>}, {transform_indices = @transform_1, window_bounds = array<i64: 1, 1, 4, 4>}, {pipeline_mode = #tpu.pipeline_mode<synchronous>, transform_indices = @transform_2, window_bounds = array<i64: 3, 4, 4>}, {pipeline_mode = #tpu.pipeline_mode<synchronous>, transform_indices = @transform_3, window_bounds = array<i64: 4, 1>}, {pipeline_mode = #tpu.pipeline_mode<synchronous>, transform_indices = @transform_4, window_bounds = array<i64: 3, 4, 4>}, {pipeline_mode = #tpu.pipeline_mode<synchronous>, transform_indices = @transform_5, window_bounds = array<i64: 4, 1>}, {transform_indices = @transform_6, window_bounds = array<i64: 1, 4, 128>}]} {
    %c0 = arith.constant 0 : index
    %c0_0 = arith.constant 0 : index
    %c0_1 = arith.constant 0 : index
    %0 = vector.load %arg2[%c0, %c0_0, %c0_1] : memref<1x4x128xf32, #tpu.memory_space<vmem>>, vector<1x4x128xf32>
    %1 = vector.shape_cast %0 : vector<1x4x128xf32> to vector<4x128xf32>
    %c0_2 = arith.constant 0 : index
    %c0_3 = arith.constant 0 : index
    %c0_4 = arith.constant 0 : index
    %c0_5 = arith.constant 0 : index
    %2 = vector.load %arg3[%c0_2, %c0_3, %c0_4, %c0_5] : memref<1x1x4x4xf32, #tpu.memory_space<vmem>>, vector<1x1x4x4xf32>
    %3 = vector.shape_cast %2 : vector<1x1x4x4xf32> to vector<4x4xf32>
    %4 = vector.extract_strided_slice %3 {offsets = [0, 0], sizes = [4, 2], strides = [1, 1]} : vector<4x4xf32> to vector<4x2xf32>
    %5 = vector.extract_strided_slice %3 {offsets = [0, 2], sizes = [4, 2], strides = [1, 1]} : vector<4x4xf32> to vector<4x2xf32>
    %cst = arith.constant 0.000000e+00 : f32
    %6 = vector.broadcast %cst : f32 to vector<4x124xf32>
    %7 = tpu.concatenate %4, %1, %5, %6 in 1 : vector<4x2xf32>, vector<4x128xf32>, vector<4x2xf32>, vector<4x124xf32> -> vector<4x256xf32>
    %cst_6 = arith.constant 0.000000e+00 : f32
    %8 = vector.broadcast %cst_6 : f32 to vector<4x256xf32>
    %9 = arith.cmpf ogt, %7, %8 : vector<4x256xf32>
    %cst_7 = arith.constant 0.00999999977 : f32
    %10 = vector.broadcast %cst_7 : f32 to vector<4x256xf32>
    %11 = arith.mulf %10, %7 : vector<4x256xf32>
    %12 = arith.select %9, %7, %11 : vector<4x256xi1>, vector<4x256xf32>
    %c0_8 = arith.constant 0 : index
    %c0_9 = arith.constant 0 : index
    %13 = vector.load %arg5[%c0_8, %c0_9] : memref<4x1xf32, #tpu.memory_space<vmem>>, vector<4x1xf32>
    %c1_i32 = arith.constant 1 : i32
    %14 = tpu.dynamic_rotate %12 by %c1_i32 dim 1 : vector<4x256xf32>, i32 -> vector<4x256xf32>
    %c0_10 = arith.constant 0 : index
    %c0_11 = arith.constant 0 : index
    %c0_12 = arith.constant 0 : index
    %15 = vector.load %arg4[%c0_10, %c0_11, %c0_12] : memref<3x4x4xf32, #tpu.memory_space<vmem>>, vector<1x4x4xf32>
    %16 = vector.shape_cast %15 : vector<1x4x4xf32> to vector<4x4xf32>
    %cst_13 = arith.constant dense<0.000000e+00> : vector<4x256xf32>
    %17 = tpu.matmul %16, %14, %cst_13 {dimension_numbers = #tpu.dot_dimension_numbers<[1], [0], [0], [1], [0, 0, 1, 1], [], []>} : vector<4x4xf32>, vector<4x256xf32>, vector<4x256xf32> -> vector<4x256xf32>
    %c1 = arith.constant 1 : index
    %c0_14 = arith.constant 0 : index
    %c0_15 = arith.constant 0 : index
    %18 = vector.load %arg4[%c1, %c0_14, %c0_15] : memref<3x4x4xf32, #tpu.memory_space<vmem>>, vector<1x4x4xf32>
    %19 = vector.shape_cast %18 : vector<1x4x4xf32> to vector<4x4xf32>
    %cst_16 = arith.constant dense<0.000000e+00> : vector<4x256xf32>
    %20 = tpu.matmul %19, %12, %cst_16 {dimension_numbers = #tpu.dot_dimension_numbers<[1], [0], [0], [1], [0, 0, 1, 1], [], []>} : vector<4x4xf32>, vector<4x256xf32>, vector<4x256xf32> -> vector<4x256xf32>
    %21 = arith.addf %17, %20 : vector<4x256xf32>
    %c255_i32 = arith.constant 255 : i32
    %22 = tpu.dynamic_rotate %12 by %c255_i32 dim 1 : vector<4x256xf32>, i32 -> vector<4x256xf32>
    %c2 = arith.constant 2 : index
    %c0_17 = arith.constant 0 : index
    %c0_18 = arith.constant 0 : index
    %23 = vector.load %arg4[%c2, %c0_17, %c0_18] : memref<3x4x4xf32, #tpu.memory_space<vmem>>, vector<1x4x4xf32>
    %24 = vector.shape_cast %23 : vector<1x4x4xf32> to vector<4x4xf32>
    %cst_19 = arith.constant dense<0.000000e+00> : vector<4x256xf32>
    %25 = tpu.matmul %24, %22, %cst_19 {dimension_numbers = #tpu.dot_dimension_numbers<[1], [0], [0], [1], [0, 0, 1, 1], [], []>} : vector<4x4xf32>, vector<4x256xf32>, vector<4x256xf32> -> vector<4x256xf32>
    %26 = arith.addf %21, %25 : vector<4x256xf32>
    %27 = vector.broadcast %13 : vector<4x1xf32> to vector<4x256xf32>
    %28 = arith.addf %26, %27 : vector<4x256xf32>
    %c128_i32 = arith.constant 128 : i32
    %29 = arith.muli %arg1, %c128_i32 : i32
    %c2_i32 = arith.constant 2 : i32
    %30 = arith.subi %29, %c2_i32 : i32
    %31 = tpu.iota {dimensions = array<i32: 1>} : vector<1x256xi32>
    %32 = vector.broadcast %30 : i32 to vector<1x256xi32>
    %33 = arith.addi %32, %31 : vector<1x256xi32>
    %c0_i32 = arith.constant 0 : i32
    %34 = vector.broadcast %c0_i32 : i32 to vector<1x256xi32>
    %35 = arith.cmpi sge, %33, %34 : vector<1x256xi32>
    %c16_i32 = arith.constant 16 : i32
    %36 = vector.broadcast %c16_i32 : i32 to vector<1x256xi32>
    %37 = arith.cmpi slt, %33, %36 : vector<1x256xi32>
    %38 = arith.andi %35, %37 : vector<1x256xi1>
    %cst_20 = arith.constant 0.000000e+00 : f32
    %39 = vector.shape_cast %38 : vector<1x256xi1> to vector<1x256xi1>
    %40 = vector.broadcast %39 : vector<1x256xi1> to vector<4x256xi1>
    %41 = vector.broadcast %cst_20 : f32 to vector<4x256xf32>
    %42 = arith.select %40, %28, %41 : vector<4x256xi1>, vector<4x256xf32>
    %cst_21 = arith.constant 0.000000e+00 : f32
    %43 = vector.broadcast %cst_21 : f32 to vector<4x256xf32>
    %44 = arith.cmpf ogt, %42, %43 : vector<4x256xf32>
    %cst_22 = arith.constant 0.00999999977 : f32
    %45 = vector.broadcast %cst_22 : f32 to vector<4x256xf32>
    %46 = arith.mulf %45, %42 : vector<4x256xf32>
    %47 = arith.select %44, %42, %46 : vector<4x256xi1>, vector<4x256xf32>
    %c0_23 = arith.constant 0 : index
    %c0_24 = arith.constant 0 : index
    %48 = vector.load %arg7[%c0_23, %c0_24] : memref<4x1xf32, #tpu.memory_space<vmem>>, vector<4x1xf32>
    %c1_i32_25 = arith.constant 1 : i32
    %49 = tpu.dynamic_rotate %47 by %c1_i32_25 dim 1 : vector<4x256xf32>, i32 -> vector<4x256xf32>
    %c0_26 = arith.constant 0 : index
    %c0_27 = arith.constant 0 : index
    %c0_28 = arith.constant 0 : index
    %50 = vector.load %arg6[%c0_26, %c0_27, %c0_28] : memref<3x4x4xf32, #tpu.memory_space<vmem>>, vector<1x4x4xf32>
    %51 = vector.shape_cast %50 : vector<1x4x4xf32> to vector<4x4xf32>
    %cst_29 = arith.constant dense<0.000000e+00> : vector<4x256xf32>
    %52 = tpu.matmul %51, %49, %cst_29 {dimension_numbers = #tpu.dot_dimension_numbers<[1], [0], [0], [1], [0, 0, 1, 1], [], []>} : vector<4x4xf32>, vector<4x256xf32>, vector<4x256xf32> -> vector<4x256xf32>
    %c1_30 = arith.constant 1 : index
    %c0_31 = arith.constant 0 : index
    %c0_32 = arith.constant 0 : index
    %53 = vector.load %arg6[%c1_30, %c0_31, %c0_32] : memref<3x4x4xf32, #tpu.memory_space<vmem>>, vector<1x4x4xf32>
    %54 = vector.shape_cast %53 : vector<1x4x4xf32> to vector<4x4xf32>
    %cst_33 = arith.constant dense<0.000000e+00> : vector<4x256xf32>
    %55 = tpu.matmul %54, %47, %cst_33 {dimension_numbers = #tpu.dot_dimension_numbers<[1], [0], [0], [1], [0, 0, 1, 1], [], []>} : vector<4x4xf32>, vector<4x256xf32>, vector<4x256xf32> -> vector<4x256xf32>
    %56 = arith.addf %52, %55 : vector<4x256xf32>
    %c255_i32_34 = arith.constant 255 : i32
    %57 = tpu.dynamic_rotate %47 by %c255_i32_34 dim 1 : vector<4x256xf32>, i32 -> vector<4x256xf32>
    %c2_35 = arith.constant 2 : index
    %c0_36 = arith.constant 0 : index
    %c0_37 = arith.constant 0 : index
    %58 = vector.load %arg6[%c2_35, %c0_36, %c0_37] : memref<3x4x4xf32, #tpu.memory_space<vmem>>, vector<1x4x4xf32>
    %59 = vector.shape_cast %58 : vector<1x4x4xf32> to vector<4x4xf32>
    %cst_38 = arith.constant dense<0.000000e+00> : vector<4x256xf32>
    %60 = tpu.matmul %59, %57, %cst_38 {dimension_numbers = #tpu.dot_dimension_numbers<[1], [0], [0], [1], [0, 0, 1, 1], [], []>} : vector<4x4xf32>, vector<4x256xf32>, vector<4x256xf32> -> vector<4x256xf32>
    %61 = arith.addf %56, %60 : vector<4x256xf32>
    %62 = vector.broadcast %48 : vector<4x1xf32> to vector<4x256xf32>
    %63 = arith.addf %61, %62 : vector<4x256xf32>
    %c254_i32 = arith.constant 254 : i32
    %64 = tpu.dynamic_rotate %63 by %c254_i32 dim 1 : vector<4x256xf32>, i32 -> vector<4x256xf32>
    %65 = vector.extract_strided_slice %64 {offsets = [0, 0], sizes = [4, 128], strides = [1, 1]} : vector<4x256xf32> to vector<4x128xf32>
    %66 = arith.addf %1, %65 : vector<4x128xf32>
    %c0_39 = arith.constant 0 : index
    %c0_40 = arith.constant 0 : index
    %c0_41 = arith.constant 0 : index
    %67 = vector.load %arg8[%c0_39, %c0_40, %c0_41] : memref<1x4x128xf32, #tpu.memory_space<vmem>>, vector<1x4x128xf32>
    %68 = vector.shape_cast %67 : vector<1x4x128xf32> to vector<4x128xf32>
    %69 = vector.shape_cast %66 : vector<4x128xf32> to vector<1x4x128xf32>
    tpu.vector_store %arg8[%c0_39, %c0_40, %c0_41], %69 {strides = array<i32>} : memref<1x4x128xf32, #tpu.memory_space<vmem>>, vector<1x4x128xf32>,
    return
  }
  func.func @transform_0(%arg0: i32, %arg1: i32) -> (i32, i32, i32) {
    %c0_i32 = arith.constant 0 : i32
    %c0_i32_0 = arith.constant 0 : i32
    return %arg0, %c0_i32, %arg1 : i32, i32, i32
  }
  func.func @transform_1(%arg0: i32, %arg1: i32) -> (i32, i32, i32, i32) {
    %c0_i32 = arith.constant 0 : i32
    %c0_i32_0 = arith.constant 0 : i32
    %c0_i32_1 = arith.constant 0 : i32
    return %arg0, %arg1, %c0_i32, %c0_i32_0 : i32, i32, i32, i32
  }
  func.func @transform_2(%arg0: i32, %arg1: i32) -> (i32, i32, i32) {
    %c0_i32 = arith.constant 0 : i32
    %c0_i32_0 = arith.constant 0 : i32
    %c0_i32_1 = arith.constant 0 : i32
    %c0_i32_2 = arith.constant 0 : i32
    return %c0_i32, %c0_i32_0, %c0_i32_1 : i32, i32, i32
  }
  func.func @transform_3(%arg0: i32, %arg1: i32) -> (i32, i32) {
    %c0_i32 = arith.constant 0 : i32
    %c0_i32_0 = arith.constant 0 : i32
    %c0_i32_1 = arith.constant 0 : i32
    return %c0_i32, %c0_i32_0 : i32, i32
  }
  func.func @transform_4(%arg0: i32, %arg1: i32) -> (i32, i32, i32) {
    %c0_i32 = arith.constant 0 : i32
    %c0_i32_0 = arith.constant 0 : i32
    %c0_i32_1 = arith.constant 0 : i32
    %c0_i32_2 = arith.constant 0 : i32
    return %c0_i32, %c0_i32_0, %c0_i32_1 : i32, i32, i32
  }
  func.func @transform_5(%arg0: i32, %arg1: i32) -> (i32, i32) {
    %c0_i32 = arith.constant 0 : i32
    %c0_i32_0 = arith.constant 0 : i32
    %c0_i32_1 = arith.constant 0 : i32
    return %c0_i32, %c0_i32_0 : i32, i32
  }
  func.func @transform_6(%arg0: i32, %arg1: i32) -> (i32, i32, i32) {
    %c0_i32 = arith.constant 0 : i32
    %c0_i32_0 = arith.constant 0 : i32
    return %arg0, %c0_i32, %arg1 : i32, i32, i32
  }
}

</mosaic_0001>

<llo_original>
// kernel: tpu_custom_call.1
$region0: #{tpu_custom_call.1}
  #allocation0 [shape = 'u32[]', space=smem, size = 0x4, offset = 0x4, fixed_abs, tag = 'smem constant byte address 0x4 - core index']
  #allocation1 [shape = 'u32[72,128]{1,0:T(1,128)}', space=vmem, size = 0x9000, scoped, tag = 'internal scratch']
  %s0 = inlined_call_operand.hbm [shape: f32[2,4,128], index: 0, kind: input, shape index: {}]
  %s1 = inlined_call_operand.hbm [shape: f32[2,1,4,4], index: 1, kind: input, shape index: {}]
  %s2 = inlined_call_operand.hbm [shape: f32[3,4,4], index: 2, kind: input, shape index: {}]
  %s3 = inlined_call_operand.vmem [shape: f32[4,1], index: 3, kind: input, shape index: {}]
  %s4 = inlined_call_operand.vmem [shape: f32[3,4,4], index: 4, kind: input, shape index: {}]
  %s5 = inlined_call_operand.vmem [shape: f32[4,1], index: 5, kind: input, shape index: {}]
  %s6 = inlined_call_operand.hbm [shape: f32[2,4,128], index: 6, kind: output, shape index: {}]
  %s7 = sld [smem:[#allocation0]]
  $region69: #{tpu_custom_call.1} parent=0
    _
  %s9 = ssub.s32 1, %s7
  %s10 = scalar_select 0, %s9, %s7
  $region1: #{tpu_custom_call.1} parent=0
    #allocation2 [shape = 'u8[4096]{0}', space=vmem, size = 0x1000, scoped, tag = 'input window, operand 0']
    #allocation3 [shape = 's32[2]{0}', space=sflag, size = 0x8, scoped, tag = 'scoped memory for tpu_custom_call.1']
    #allocation4 [shape = 's32[2]{0}', space=sflag, size = 0x8, scoped, tag = 'scoped memory for tpu_custom_call.1']
    #allocation5 [shape = 'u8[4096]{0}', space=vmem, size = 0x1000, scoped, tag = 'input window, operand 1']
    #allocation6 [shape = 's32[2]{0}', space=sflag, size = 0x8, scoped, tag = 'scoped memory for tpu_custom_call.1']
    #allocation7 [shape = 'u8[6144]{0}', space=vmem, size = 0x1800, scoped, tag = 'input window, operand 2, single buffered']
    #allocation8 [shape = 'u8[4096]{0}', space=vmem, size = 0x1000, scoped, tag = 'output window, operand 0']
    %11 = vsyncpa [#allocation3], 0
    %s12 = scalar_lea.sflag [#allocation3], 1
    %13 = vsyncpa %s12, 0
    %14 = vsyncpa [#allocation6], 0
    %s15 = scalar_lea.sflag [#allocation6], 1
    %16 = vsyncpa %s15, 0
    %17 = vsyncpa [#allocation4], 0
    %s18 = scalar_lea.sflag [#allocation4], 1
    %19 = vsyncpa %s18, 0
    loop: start=0, step=1, limit=4
    $region2: #{tpu_custom_call.1} parent=1 // loop_pre_header
      _
    $region3: #{tpu_custom_call.1} parent=1 // loop_header
      %s21 = sphi 0, %s25
      %p22 = scmp.ge.s32.totalorder %s21, 4
      %s28 = sphi 0, %s40
      %s29 = sphi 0, %s36
      %s30 = sphi 0, %s28
      %s31 = sphi 0, %s29
      %s32 = sphi 0, %s30
      %s33 = sphi 0, %s31
      %s45 = sphi 0, %s47
      %s48 = sphi 0, %s45
      %s49 = sphi 0, %s48
      %s65 = sphi 0, %s49
      %s73 = sphi 0, %s75
      %s76 = sphi 0, %s73
      %s77 = sphi 0, %s76
      %s93 = sphi 0, %s77
      %s97 = sphi 0, %s97
      %s99 = sphi 0, %s97
      %s100 = sphi 0, %s99
      %s114 = sphi 0, %s100
      %s118 = sphi 0, %s118
      %s120 = sphi 0, %s118
      %s121 = sphi 0, %s120
      %s135 = sphi 0, %s121
      %s139 = sphi 0, %s139
      %s141 = sphi 0, %s139
      %s142 = sphi 0, %s141
      %s156 = sphi 0, %s142
      %s160 = sphi 0, %s160
      %s162 = sphi 0, %s160
      %s163 = sphi 0, %s162
      %s177 = sphi 0, %s163
      %s185 = sphi 0, %s187
      %s188 = sphi 0, %s185
      %s189 = sphi 0, %s188
      %s205 = sphi 0, %s189
    $region4: #{tpu_custom_call.1} parent=1 // loop_header_branch
      %24 = sbr.rel (%p22) target = $region8
    $region5: #{tpu_custom_call.1} parent=1 // loop_body
      %s26 = ssub.s32 %s21, 1
      %s27 = ssub.s32 %s21, 2
      %s34 = sadd.s32 1, %s29
      %p35 = scmp.ge.s32.totalorder %s34, 1
      %s36 = scalar_select %p35, 0, %s34
      %s37 = sadd.s32 1, %s28
      %s38 = scalar_select %p35, %s37, %s28
      %p39 = scmp.ge.s32.totalorder %s38, 2
      %s40 = scalar_select %p39, 0, %s38
      %s41 = ssub.s32 %s28, %s40
      %s42 = ssub.s32 %s29, %s36
      %s43 = sor.u32 %s41, %s42
      %p44 = scmp.eq.s32.totalorder %s43, 0
      %s46 = sadd.s32 %s45, 1
      %s47 = scalar_select %p44, %s45, %s46
      %p50 = pneg %p44
      %p51 = scmp.eq.s32.totalorder %s21, 1
      %p52 = por %p50, %p51
      %p53 = scmp.ne.s32.totalorder %s45, %s48
      %p54 = scmp.eq.s32.totalorder %s21, 0
      %p55 = por %p53, %p54
      %p56 = scmp.ne.s32.totalorder %s45, %s48
      %p57 = scmp.eq.s32.totalorder %s26, 1
      %p58 = por %p56, %p57
      %p59 = scmp.ne.s32.totalorder %s48, %s49
      %p60 = scmp.eq.s32.totalorder %s26, 0
      %p61 = por %p59, %p60
      %p62 = scmp.ne.s32.totalorder %s48, %s49
      %p63 = scmp.eq.s32.totalorder %s27, 1
      %p64 = por %p62, %p63
      %p66 = scmp.ne.s32.totalorder %s49, %s65
      %p67 = scmp.eq.s32.totalorder %s27, 0
      %p68 = por %p66, %p67
      %s69 = ssub.s32 %s28, %s40
      %s70 = ssub.s32 %s29, %s36
      %s71 = sor.u32 %s69, %s70
      %p72 = scmp.eq.s32.totalorder %s71, 0
      %s74 = sadd.s32 %s73, 1
      %s75 = scalar_select %p72, %s73, %s74
      %p78 = pneg %p72
      %p79 = scmp.eq.s32.totalorder %s21, 1
      %p80 = por %p78, %p79
      %p81 = scmp.ne.s32.totalorder %s73, %s76
      %p82 = scmp.eq.s32.totalorder %s21, 0
      %p83 = por %p81, %p82
      %p84 = scmp.ne.s32.totalorder %s73, %s76
      %p85 = scmp.eq.s32.totalorder %s26, 1
      %p86 = por %p84, %p85
      %p87 = scmp.ne.s32.totalorder %s76, %s77
      %p88 = scmp.eq.s32.totalorder %s26, 0
      %p89 = por %p87, %p88
      %p90 = scmp.ne.s32.totalorder %s76, %s77
      %p91 = scmp.eq.s32.totalorder %s27, 1
      %p92 = por %p90, %p91
      %p94 = scmp.ne.s32.totalorder %s77, %s93
      %p95 = scmp.eq.s32.totalorder %s27, 0
      %p96 = por %p94, %p95
      %s98 = sadd.s32 %s97, 1
      %p101 = scmp.eq.s32.totalorder %s21, 1
      %p102 = scmp.ne.s32.totalorder %s97, %s99
      %p103 = scmp.eq.s32.totalorder %s21, 0
      %p104 = por %p102, %p103
      %p105 = scmp.ne.s32.totalorder %s97, %s99
      %p106 = scmp.eq.s32.totalorder %s26, 1
      %p107 = por %p105, %p106
      %p108 = scmp.ne.s32.totalorder %s99, %s100
      %p109 = scmp.eq.s32.totalorder %s26, 0
      %p110 = por %p108, %p109
      %p111 = scmp.ne.s32.totalorder %s99, %s100
      %p112 = scmp.eq.s32.totalorder %s27, 1
      %p113 = por %p111, %p112
      %p115 = scmp.ne.s32.totalorder %s100, %s114
      %p116 = scmp.eq.s32.totalorder %s27, 0
      %p117 = por %p115, %p116
      %s119 = sadd.s32 %s118, 1
      %p122 = scmp.eq.s32.totalorder %s21, 1
      %p123 = scmp.ne.s32.totalorder %s118, %s120
      %p124 = scmp.eq.s32.totalorder %s21, 0
      %p125 = por %p123, %p124
      %p126 = scmp.ne.s32.totalorder %s118, %s120
      %p127 = scmp.eq.s32.totalorder %s26, 1
      %p128 = por %p126, %p127
      %p129 = scmp.ne.s32.totalorder %s120, %s121
      %p130 = scmp.eq.s32.totalorder %s26, 0
      %p131 = por %p129, %p130
      %p132 = scmp.ne.s32.totalorder %s120, %s121
      %p133 = scmp.eq.s32.totalorder %s27, 1
      %p134 = por %p132, %p133
      %p136 = scmp.ne.s32.totalorder %s121, %s135
      %p137 = scmp.eq.s32.totalorder %s27, 0
      %p138 = por %p136, %p137
      %s140 = sadd.s32 %s139, 1
      %p143 = scmp.eq.s32.totalorder %s21, 1
      %p144 = scmp.ne.s32.totalorder %s139, %s141
      %p145 = scmp.eq.s32.totalorder %s21, 0
      %p146 = por %p144, %p145
      %p147 = scmp.ne.s32.totalorder %s139, %s141
      %p148 = scmp.eq.s32.totalorder %s26, 1
      %p149 = por %p147, %p148
      %p150 = scmp.ne.s32.totalorder %s141, %s142
      %p151 = scmp.eq.s32.totalorder %s26, 0
      %p152 = por %p150, %p151
      %p153 = scmp.ne.s32.totalorder %s141, %s142
      %p154 = scmp.eq.s32.totalorder %s27, 1
      %p155 = por %p153, %p154
      %p157 = scmp.ne.s32.totalorder %s142, %s156
      %p158 = scmp.eq.s32.totalorder %s27, 0
      %p159 = por %p157, %p158
      %s161 = sadd.s32 %s160, 1
      %p164 = scmp.eq.s32.totalorder %s21, 1
      %p165 = scmp.ne.s32.totalorder %s160, %s162
      %p166 = scmp.eq.s32.totalorder %s21, 0
      %p167 = por %p165, %p166
      %p168 = scmp.ne.s32.totalorder %s160, %s162
      %p169 = scmp.eq.s32.totalorder %s26, 1
      %p170 = por %p168, %p169
      %p171 = scmp.ne.s32.totalorder %s162, %s163
      %p172 = scmp.eq.s32.totalorder %s26, 0
      %p173 = por %p171, %p172
      %p174 = scmp.ne.s32.totalorder %s162, %s163
      %p175 = scmp.eq.s32.totalorder %s27, 1
      %p176 = por %p174, %p175
      %p178 = scmp.ne.s32.totalorder %s163, %s177
      %p179 = scmp.eq.s32.totalorder %s27, 0
      %p180 = por %p178, %p179
      %s181 = ssub.s32 %s28, %s40
      %s182 = ssub.s32 %s29, %s36
      %s183 = sor.u32 %s181, %s182
      %p184 = scmp.eq.s32.totalorder %s183, 0
      %s186 = sadd.s32 %s185, 1
      %s187 = scalar_select %p184, %s185, %s186
      %p190 = pneg %p184
      %p191 = scmp.eq.s32.totalorder %s21, 1
      %p192 = por %p190, %p191
      %p193 = scmp.ne.s32.totalorder %s185, %s188
      %p194 = scmp.eq.s32.totalorder %s21, 0
      %p195 = por %p193, %p194
      %p196 = scmp.ne.s32.totalorder %s185, %s188
      %p197 = scmp.eq.s32.totalorder %s26, 1
      %p198 = por %p196, %p197
      %p199 = scmp.ne.s32.totalorder %s188, %s189
      %p200 = scmp.eq.s32.totalorder %s26, 0
      %p201 = por %p199, %p200
      %p202 = scmp.ne.s32.totalorder %s188, %s189
      %p203 = scmp.eq.s32.totalorder %s27, 1
      %p204 = por %p202, %p203
      %p206 = scmp.ne.s32.totalorder %s189, %s205
      %p207 = scmp.eq.s32.totalorder %s27, 0
      %p208 = por %p206, %p207
      %p209 = scmp.le.s32.totalorder 1, %s21
      %p210 = scmp.lt.s32.totalorder %s21, 3
      %p211 = pnand %p209, %p210
      %p212 = pneg %p211
      // Predicated region
      $region9: #{tpu_custom_call.1} parent=5 // pred_check
        _
      $region10: #{tpu_custom_call.1} parent=5 // pred_check_branch
        %214 = sbr.rel (%p211) target = $region12
      $region11: #{tpu_custom_call.1} parent=5 // pred_region
        %s215 = ssub.s32 %s21, 1
        // Predicated region
        $region13: #{tpu_custom_call.1} parent=11 // pred_check
          %p216 = pneg %p110
        $region14: #{tpu_custom_call.1} parent=11 // pred_check_branch
          %218 = sbr.rel (%p216) target = $region16
        $region15: #{tpu_custom_call.1} parent=11 // pred_region
          %220 = vsyncadd [#allocation6], 0
          %s221 = sshll.u32 %s2, 4
          %s222 = int_to_ptr.hbm [resolvable:$true] %s221
          %s223 = sshll.u32 [#allocation7], 4
          %s224 = int_to_ptr.vmem [resolvable:$true] %s223
          %229 = dma.hbm_to_vmem [thread:$0]  %s222, 192, %s224, [#allocation6], 64, 64, 4
        $region16: #{tpu_custom_call.1} parent=11 // pred_fallthru
          _
        // Predicated region
        $region17: #{tpu_custom_call.1} parent=11 // pred_check
          %p230 = pneg %p131
        $region18: #{tpu_custom_call.1} parent=11 // pred_check_branch
          %232 = sbr.rel (%p230) target = $region20
        $region19: #{tpu_custom_call.1} parent=11 // pred_region
          _
        $region20: #{tpu_custom_call.1} parent=11 // pred_fallthru
          _
        // Predicated region
        $region21: #{tpu_custom_call.1} parent=11 // pred_check
          %p233 = pneg %p152
        $region22: #{tpu_custom_call.1} parent=11 // pred_check_branch
          %235 = sbr.rel (%p233) target = $region24
        $region23: #{tpu_custom_call.1} parent=11 // pred_region
          _
        $region24: #{tpu_custom_call.1} parent=11 // pred_fallthru
          _
        // Predicated region
        $region25: #{tpu_custom_call.1} parent=11 // pred_check
          %p236 = pneg %p173
        $region26: #{tpu_custom_call.1} parent=11 // pred_check_branch
          %238 = sbr.rel (%p236) target = $region28
        $region27: #{tpu_custom_call.1} parent=11 // pred_region
          _
        $region28: #{tpu_custom_call.1} parent=11 // pred_fallthru
          _
      $region12: #{tpu_custom_call.1} parent=5 // pred_fallthru
        _
      %p239 = scmp.lt.s32.totalorder %s21, 2
      // Predicated region
      $region29: #{tpu_custom_call.1} parent=5 // pred_check
        %p240 = pneg %p239
      $region30: #{tpu_custom_call.1} parent=5 // pred_check_branch
        %242 = sbr.rel (%p240) target = $region32
      $region31: #{tpu_custom_call.1} parent=5 // pred_region
        // Predicated region
        $region33: #{tpu_custom_call.1} parent=31 // pred_check
          %p243 = pneg %p55
        $region34: #{tpu_custom_call.1} parent=31 // pred_check_branch
          %245 = sbr.rel (%p243) target = $region36
        $region35: #{tpu_custom_call.1} parent=31 // pred_region
          %s246 = sand.u32 %s45, 1
          %s247 = scalar_lea.sflag [#allocation3], %s246
          %s248 = sand.u32 %s45, 1
          %s249 = smul.addr %s248, 4
          %s250 = scalar_lea.vmem [#allocation2], %s249
          %252 = vsyncadd %s247, 0
          %s253 = sadd.s32 %s29, %s28
          %s254 = smul.addr %s253, 4
          %s255 = scalar_lea.hbm %s0, %s254
          %s257 = sshll.u32 %s255, 4
          %s258 = int_to_ptr.hbm [resolvable:$true] %s257
          %s259 = sshll.u32 %s250, 4
          %s260 = int_to_ptr.vmem [resolvable:$true] %s259
          %262 = dma.hbm_to_vmem [thread:$0]  %s258, 64, %s260, %s247
        $region36: #{tpu_custom_call.1} parent=31 // pred_fallthru
          _
        // Predicated region
        $region37: #{tpu_custom_call.1} parent=31 // pred_check
          %p263 = pneg %p83
        $region38: #{tpu_custom_call.1} parent=31 // pred_check_branch
          %265 = sbr.rel (%p263) target = $region40
        $region39: #{tpu_custom_call.1} parent=31 // pred_region
          %s266 = sand.u32 %s21, 1
          %s267 = scalar_lea.sflag [#allocation6], %s266
          %s268 = sand.u32 %s73, 1
          %s269 = smul.addr %s268, 4
          %s270 = scalar_lea.vmem [#allocation5], %s269
          %272 = vsyncadd %s267, 0
          %s273 = sadd.s32 %s29, %s28
          %s274 = smul.addr %s273, 4
          %s275 = scalar_lea.hbm %s1, %s274
          %s277 = sshll.u32 %s275, 4
          %s278 = int_to_ptr.hbm [resolvable:$true] %s277
          %s279 = sshll.u32 %s270, 4
          %s280 = int_to_ptr.vmem [resolvable:$true] %s279
          %282 = dma.hbm_to_vmem [thread:$0]  %s278, 64, %s280, %s267
        $region40: #{tpu_custom_call.1} parent=31 // pred_fallthru
          _
      $region32: #{tpu_custom_call.1} parent=5 // pred_fallthru
        _
      %p283 = scmp.le.s32.totalorder 1, %s21
      %p284 = scmp.lt.s32.totalorder %s21, 3
      %p285 = pnand %p283, %p284
      %p286 = pneg %p285
      // Predicated region
      $region41: #{tpu_custom_call.1} parent=5 // pred_check
        _
      $region42: #{tpu_custom_call.1} parent=5 // pred_check_branch
        %288 = sbr.rel (%p285) target = $region44
      $region43: #{tpu_custom_call.1} parent=5 // pred_region
        %s289 = ssub.s32 %s21, 1
        %s290 = sand.u32 %s48, 1
        %s291 = scalar_lea.sflag [#allocation3], %s290
        %s292 = sand.u32 %s48, 1
        %s293 = smul.addr %s292, 4
        %s294 = scalar_lea.vmem [#allocation2], %s293
        // Predicated region
        $region45: #{tpu_custom_call.1} parent=43 // pred_check
          %p295 = pneg %p61
        $region46: #{tpu_custom_call.1} parent=43 // pred_check_branch
          %297 = sbr.rel (%p295) target = $region48
        $region47: #{tpu_custom_call.1} parent=43 // pred_region
          %299 = dma.done %s291, 64
        $region48: #{tpu_custom_call.1} parent=43 // pred_fallthru
          _
        %s300 = sand.u32 %s26, 1
        %s301 = scalar_lea.sflag [#allocation6], %s300
        %s302 = sand.u32 %s76, 1
        %s303 = smul.addr %s302, 4
        %s304 = scalar_lea.vmem [#allocation5], %s303
        // Predicated region
        $region49: #{tpu_custom_call.1} parent=43 // pred_check
          %p305 = pneg %p89
        $region50: #{tpu_custom_call.1} parent=43 // pred_check_branch
          %307 = sbr.rel (%p305) target = $region52
        $region51: #{tpu_custom_call.1} parent=43 // pred_region
          %309 = dma.done %s301, 64
        $region52: #{tpu_custom_call.1} parent=43 // pred_fallthru
          _
        // Predicated region
        $region53: #{tpu_custom_call.1} parent=43 // pred_check
          %p310 = pneg %p110
        $region54: #{tpu_custom_call.1} parent=43 // pred_check_branch
          %312 = sbr.rel (%p310) target = $region56
        $region55: #{tpu_custom_call.1} parent=43 // pred_region
          %314 = dma.done [#allocation6], 192
        $region56: #{tpu_custom_call.1} parent=43 // pred_fallthru
          _
        %s315 = sand.u32 %s48, 1
        %s316 = scalar_lea.sflag [#allocation3], %s315
        %s317 = sand.u32 %s48, 1
        %s318 = smul.addr %s317, 4
        %s319 = scalar_lea.vmem [#allocation2], %s318
        %p320 = pneg %p61
        %p321 = pneg %p58
        %s322 = sand.u32 %s26, 1
        %s323 = scalar_lea.sflag [#allocation6], %s322
        %s324 = sand.u32 %s76, 1
        %s325 = smul.addr %s324, 4
        %s326 = scalar_lea.vmem [#allocation5], %s325
        %p327 = pneg %p89
        %p328 = pneg %p86
        %p329 = pneg %p110
        %p330 = pneg %p107
        %p331 = pneg %p131
        %p332 = pneg %p128
        %p333 = pneg %p152
        %p334 = pneg %p149
        %p335 = pneg %p173
        %p336 = pneg %p170
        %p337 = pneg %p201
        %p338 = pneg %p198
        %s339 = sand.u32 %s188, 1
        %s340 = scalar_lea.sflag [#allocation4], %s339
        %s341 = sand.u32 %s188, 1
        %s342 = smul.addr %s341, 4
        %s343 = scalar_lea.vmem [#allocation8], %s342
        %v344 = vld [vmem:[%s294] sm:$0xf]
        %v345 = vld [vmem:[%s304] sm:$0xf]
        %347 = vrot.lane.b32.xlu0 %v344, 2
        %v348 = vpop.permute.xlu0 %347
        %vm350 = vcmask 15360
        %v351 = vsel %vm350, %v345, %v348
        %v352 = vsel %vm350, %v348, %v345
        %vm353 = vcmask 31744
        %v354 = vsel %vm353, %v352, 0.0
        %vm355 = vcmp.gt.f32.partialorder %v351, 0.0
        %vm356 = vcmp.gt.f32.partialorder %v354, 0.0
        %v357 = vmul.f32 %v351, 0.01
        %v358 = vmul.f32 %v354, 0.01
        %v359 = vsel %vm355, %v351, %v357
        %v360 = vsel %vm356, %v354, %v358
        %v361 = vld [vmem:[%s3] sm:$0xf]
        %362 = vrot.lane.b32.xlu0 %v359, 1
        %v363 = vpop.permute.xlu0 %362
        %364 = vrot.lane.b32.xlu0 %v360, 1
        %v365 = vpop.permute.xlu0 %364
        %v366 = vlaneseq
        %v367 = vand.u32 %v366, 127
        %vm368 = vcmp.lt.s32.totalorder %v367, 1
        %v369 = vsel %vm368, %v363, %v365
        %v370 = vsel %vm368, %v365, %v363
        %v371 = vld [vmem:[#allocation7] sm:$0xf]
        %s372 = scalar_lea.vmem [#allocation7], 4
        %v373 = vld [vmem:[%s372] sm:$0xf]
        %v375 = vsel %vm353, %v373, 0
        %vm377 = vcmask 1043456
        %v379 = vsel %vm377, %v359, 0
        %v382 = vsel %vm377, %v360, 0
        %384 = vmatpush.msra.mxu0 0.0
        %385 = vmatpush.msra.mxu0 0.0
        %386 = vmatpush.msra.mxu0 0.0
        %387 = vmatpush.msra.mxu0 0.0
        %388 = vmatpush.msra.mxu0 0.0
        %389 = vmatpush.msra.mxu0 0.0
        %390 = vmatpush.msra.mxu0 0.0
        %391 = vmatpush.msra.mxu0 0.0
        %392 = vmatpush.msra.mxu0 0.0
        %393 = vmatpush.msra.mxu0 0.0
        %394 = vmatpush.msra.mxu0 0.0
        %395 = vmatpush.msra.mxu0 0.0
        %396 = vmatpush.msra.mxu0 0.0
        %397 = vmatpush.msra.mxu0 0.0
        %398 = vmatpush.msra.mxu0 0.0
        %399 = vmatpush.msra.mxu0 %v379
        %400 = vmatmul.f32.gmra.mxu0 %v375
        %v401 = vpop.f32.mrf.mxu0
        %v402 = vadd.f32 0.0, %v401
        %403 = vdwg.mxu0
        %404 = vmatpush.msra.mxu0 0.0
        %405 = vmatpush.msra.mxu0 0.0
        %406 = vmatpush.msra.mxu0 0.0
        %407 = vmatpush.msra.mxu0 0.0
        %408 = vmatpush.msra.mxu0 0.0
        %409 = vmatpush.msra.mxu0 0.0
        %410 = vmatpush.msra.mxu0 0.0
        %411 = vmatpush.msra.mxu0 0.0
        %412 = vmatpush.msra.mxu0 0.0
        %413 = vmatpush.msra.mxu0 0.0
        %414 = vmatpush.msra.mxu0 0.0
        %415 = vmatpush.msra.mxu0 0.0
        %416 = vmatpush.msra.mxu0 0.0
        %417 = vmatpush.msra.mxu0 0.0
        %418 = vmatpush.msra.mxu0 0.0
        %419 = vmatpush.msra.mxu0 %v382
        %420 = vmatmul.f32.gmra.mxu0 %v375
        %v421 = vpop.f32.mrf.mxu0
        %v422 = vadd.f32 0.0, %v421
        %423 = vdwg.mxu0
        %v425 = vsel %vm353, %v371, 0
        %v428 = vsel %vm377, %v370, 0
        %v431 = vsel %vm377, %v369, 0
        %433 = vmatpush.msra.mxu0 0.0
        %434 = vmatpush.msra.mxu0 0.0
        %435 = vmatpush.msra.mxu0 0.0
        %436 = vmatpush.msra.mxu0 0.0
        %437 = vmatpush.msra.mxu0 0.0
        %438 = vmatpush.msra.mxu0 0.0
        %439 = vmatpush.msra.mxu0 0.0
        %440 = vmatpush.msra.mxu0 0.0
        %441 = vmatpush.msra.mxu0 0.0
        %442 = vmatpush.msra.mxu0 0.0
        %443 = vmatpush.msra.mxu0 0.0
        %444 = vmatpush.msra.mxu0 0.0
        %445 = vmatpush.msra.mxu0 0.0
        %446 = vmatpush.msra.mxu0 0.0
        %447 = vmatpush.msra.mxu0 0.0
        %448 = vmatpush.msra.mxu0 %v428
        %449 = vmatmul.f32.gmra.mxu0 %v425
        %v450 = vpop.f32.mrf.mxu0
        %v451 = vadd.f32 %v402, %v450
        %452 = vdwg.mxu0
        %453 = vmatpush.msra.mxu0 0.0
        %454 = vmatpush.msra.mxu0 0.0
        %455 = vmatpush.msra.mxu0 0.0
        %456 = vmatpush.msra.mxu0 0.0
        %457 = vmatpush.msra.mxu0 0.0
        %458 = vmatpush.msra.mxu0 0.0
        %459 = vmatpush.msra.mxu0 0.0
        %460 = vmatpush.msra.mxu0 0.0
        %461 = vmatpush.msra.mxu0 0.0
        %462 = vmatpush.msra.mxu0 0.0
        %463 = vmatpush.msra.mxu0 0.0
        %464 = vmatpush.msra.mxu0 0.0
        %465 = vmatpush.msra.mxu0 0.0
        %466 = vmatpush.msra.mxu0 0.0
        %467 = vmatpush.msra.mxu0 0.0
        %468 = vmatpush.msra.mxu0 %v431
        %469 = vmatmul.f32.gmra.mxu0 %v425
        %v470 = vpop.f32.mrf.mxu0
        %v471 = vadd.f32 %v422, %v470
        %472 = vdwg.mxu0
        %473 = vrot.lane.b32.xlu0 %v359, 127
        %v474 = vpop.permute.xlu0 %473
        %475 = vrot.lane.b32.xlu0 %v360, 127
        %v476 = vpop.permute.xlu0 %475
        %vm477 = vcmp.lt.s32.totalorder %v367, 127
        %v478 = vsel %vm477, %v474, %v476
        %v479 = vsel %vm477, %v476, %v474
        %s480 = scalar_lea.vmem [#allocation7], 8
        %v481 = vld [vmem:[%s480] sm:$0xf]
        %v483 = vsel %vm353, %v481, 0
        %v486 = vsel %vm377, %v478, 0
        %v489 = vsel %vm377, %v479, 0
        %491 = vmatpush.msra.mxu0 0.0
        %492 = vmatpush.msra.mxu0 0.0
        %493 = vmatpush.msra.mxu0 0.0
        %494 = vmatpush.msra.mxu0 0.0
        %495 = vmatpush.msra.mxu0 0.0
        %496 = vmatpush.msra.mxu0 0.0
        %497 = vmatpush.msra.mxu0 0.0
        %498 = vmatpush.msra.mxu0 0.0
        %499 = vmatpush.msra.mxu0 0.0
        %500 = vmatpush.msra.mxu0 0.0
        %501 = vmatpush.msra.mxu0 0.0
        %502 = vmatpush.msra.mxu0 0.0
        %503 = vmatpush.msra.mxu0 0.0
        %504 = vmatpush.msra.mxu0 0.0
        %505 = vmatpush.msra.mxu0 0.0
        %506 = vmatpush.msra.mxu0 %v486
        %507 = vmatmul.f32.gmra.mxu0 %v483
        %v508 = vpop.f32.mrf.mxu0
        %v509 = vadd.f32 0.0, %v508
        %510 = vdwg.mxu0
        %511 = vmatpush.msra.mxu0 0.0
        %512 = vmatpush.msra.mxu0 0.0
        %513 = vmatpush.msra.mxu0 0.0
        %514 = vmatpush.msra.mxu0 0.0
        %515 = vmatpush.msra.mxu0 0.0
        %516 = vmatpush.msra.mxu0 0.0
        %517 = vmatpush.msra.mxu0 0.0
        %518 = vmatpush.msra.mxu0 0.0
        %519 = vmatpush.msra.mxu0 0.0
        %520 = vmatpush.msra.mxu0 0.0
        %521 = vmatpush.msra.mxu0 0.0
        %522 = vmatpush.msra.mxu0 0.0
        %523 = vmatpush.msra.mxu0 0.0
        %524 = vmatpush.msra.mxu0 0.0
        %525 = vmatpush.msra.mxu0 0.0
        %526 = vmatpush.msra.mxu0 %v489
        %527 = vmatmul.f32.gmra.mxu0 %v483
        %v528 = vpop.f32.mrf.mxu0
        %v529 = vadd.f32 0.0, %v528
        %530 = vdwg.mxu0
        %v531 = vadd.f32 %v451, %v509
        %v532 = vadd.f32 %v471, %v529
        %534 = vset.pattern.permute.xlu0 0
        %535 = vperm.xlu0 %534, %v361
        %v536 = vpop.permute.xlu0 %535
        %v538 = vadd.f32 %v531, %v536
        %v539 = vadd.f32 %v532, %v536
        %s540 = smul.u32 %s31, 128
        %s541 = ssub.s32 %s540, 2
        %v542 = vadd.s32 %v367, 128
        %v543 = vstv %s541
        %v544 = vadd.s32 %v543, %v367
        %v545 = vadd.s32 %v543, %v542
        %vm546 = vcmp.ge.s32.totalorder %v544, 0
        %vm547 = vcmp.ge.s32.totalorder %v545, 0
        %vm548 = vcmp.lt.s32.totalorder %v544, 16
        %vm549 = vcmp.lt.s32.totalorder %v545, 16
        %vm550 = vmand %vm546, %vm548
        %vm551 = vmand %vm547, %vm549
        %v552 = vsel %vm550, 1, 0
        %v553 = vsel %vm551, 1, 0
        %vm554 = vcmp.eq.s32.totalorder %v552, 1
        %vm555 = vcmp.eq.s32.totalorder %v553, 1
        %v556 = vsel %vm554, %v538, 0.0
        %v557 = vsel %vm555, %v539, 0.0
        %vm558 = vcmp.gt.f32.partialorder %v556, 0.0
        %vm559 = vcmp.gt.f32.partialorder %v557, 0.0
        %v560 = vmul.f32 %v556, 0.01
        %v561 = vmul.f32 %v557, 0.01
        %v562 = vsel %vm558, %v556, %v560
        %v563 = vsel %vm559, %v557, %v561
        %v564 = vld [vmem:[%s5] sm:$0xf]
        %565 = vrot.lane.b32.xlu0 %v562, 1
        %v566 = vpop.permute.xlu0 %565
        %567 = vrot.lane.b32.xlu0 %v563, 1
        %v568 = vpop.permute.xlu0 %567
        %v569 = vsel %vm368, %v566, %v568
        %v570 = vsel %vm368, %v568, %v566
        %v571 = vld [vmem:[%s4] sm:$0xf]
        %s572 = scalar_lea.vmem %s4, 4
        %v573 = vld [vmem:[%s572] sm:$0xf]
        %v575 = vsel %vm353, %v573, 0
        %v578 = vsel %vm377, %v562, 0
        %v581 = vsel %vm377, %v563, 0
        %583 = vmatpush.msra.mxu0 0.0
        %584 = vmatpush.msra.mxu0 0.0
        %585 = vmatpush.msra.mxu0 0.0
        %586 = vmatpush.msra.mxu0 0.0
        %587 = vmatpush.msra.mxu0 0.0
        %588 = vmatpush.msra.mxu0 0.0
        %589 = vmatpush.msra.mxu0 0.0
        %590 = vmatpush.msra.mxu0 0.0
        %591 = vmatpush.msra.mxu0 0.0
        %592 = vmatpush.msra.mxu0 0.0
        %593 = vmatpush.msra.mxu0 0.0
        %594 = vmatpush.msra.mxu0 0.0
        %595 = vmatpush.msra.mxu0 0.0
        %596 = vmatpush.msra.mxu0 0.0
        %597 = vmatpush.msra.mxu0 0.0
        %598 = vmatpush.msra.mxu0 %v578
        %599 = vmatmul.f32.gmra.mxu0 %v575
        %v600 = vpop.f32.mrf.mxu0
        %v601 = vadd.f32 0.0, %v600
        %602 = vdwg.mxu0
        %603 = vmatpush.msra.mxu0 0.0
        %604 = vmatpush.msra.mxu0 0.0
        %605 = vmatpush.msra.mxu0 0.0
        %606 = vmatpush.msra.mxu0 0.0
        %607 = vmatpush.msra.mxu0 0.0
        %608 = vmatpush.msra.mxu0 0.0
        %609 = vmatpush.msra.mxu0 0.0
        %610 = vmatpush.msra.mxu0 0.0
        %611 = vmatpush.msra.mxu0 0.0
        %612 = vmatpush.msra.mxu0 0.0
        %613 = vmatpush.msra.mxu0 0.0
        %614 = vmatpush.msra.mxu0 0.0
        %615 = vmatpush.msra.mxu0 0.0
        %616 = vmatpush.msra.mxu0 0.0
        %617 = vmatpush.msra.mxu0 0.0
        %618 = vmatpush.msra.mxu0 %v581
        %619 = vmatmul.f32.gmra.mxu0 %v575
        %v620 = vpop.f32.mrf.mxu0
        %v621 = vadd.f32 0.0, %v620
        %622 = vdwg.mxu0
        %v624 = vsel %vm353, %v571, 0
        %v627 = vsel %vm377, %v570, 0
        %v630 = vsel %vm377, %v569, 0
        %632 = vmatpush.msra.mxu0 0.0
        %633 = vmatpush.msra.mxu0 0.0
        %634 = vmatpush.msra.mxu0 0.0
        %635 = vmatpush.msra.mxu0 0.0
        %636 = vmatpush.msra.mxu0 0.0
        %637 = vmatpush.msra.mxu0 0.0
        %638 = vmatpush.msra.mxu0 0.0
        %639 = vmatpush.msra.mxu0 0.0
        %640 = vmatpush.msra.mxu0 0.0
        %641 = vmatpush.msra.mxu0 0.0
        %642 = vmatpush.msra.mxu0 0.0
        %643 = vmatpush.msra.mxu0 0.0
        %644 = vmatpush.msra.mxu0 0.0
        %645 = vmatpush.msra.mxu0 0.0
        %646 = vmatpush.msra.mxu0 0.0
        %647 = vmatpush.msra.mxu0 %v627
        %648 = vmatmul.f32.gmra.mxu0 %v624
        %v649 = vpop.f32.mrf.mxu0
        %v650 = vadd.f32 %v601, %v649
        %651 = vdwg.mxu0
        %652 = vmatpush.msra.mxu0 0.0
        %653 = vmatpush.msra.mxu0 0.0
        %654 = vmatpush.msra.mxu0 0.0
        %655 = vmatpush.msra.mxu0 0.0
        %656 = vmatpush.msra.mxu0 0.0
        %657 = vmatpush.msra.mxu0 0.0
        %658 = vmatpush.msra.mxu0 0.0
        %659 = vmatpush.msra.mxu0 0.0
        %660 = vmatpush.msra.mxu0 0.0
        %661 = vmatpush.msra.mxu0 0.0
        %662 = vmatpush.msra.mxu0 0.0
        %663 = vmatpush.msra.mxu0 0.0
        %664 = vmatpush.msra.mxu0 0.0
        %665 = vmatpush.msra.mxu0 0.0
        %666 = vmatpush.msra.mxu0 0.0
        %667 = vmatpush.msra.mxu0 %v630
        %668 = vmatmul.f32.gmra.mxu0 %v624
        %v669 = vpop.f32.mrf.mxu0
        %v670 = vadd.f32 %v621, %v669
        %671 = vdwg.mxu0
        %672 = vrot.lane.b32.xlu0 %v562, 127
        %v673 = vpop.permute.xlu0 %672
        %674 = vrot.lane.b32.xlu0 %v563, 127
        %v675 = vpop.permute.xlu0 %674
        %v676 = vsel %vm477, %v673, %v675
        %v677 = vsel %vm477, %v675, %v673
        %s678 = scalar_lea.vmem %s4, 8
        %v679 = vld [vmem:[%s678] sm:$0xf]
        %v681 = vsel %vm353, %v679, 0
        %v684 = vsel %vm377, %v676, 0
        %v687 = vsel %vm377, %v677, 0
        %689 = vmatpush.msra.mxu0 0.0
        %690 = vmatpush.msra.mxu0 0.0
        %691 = vmatpush.msra.mxu0 0.0
        %692 = vmatpush.msra.mxu0 0.0
        %693 = vmatpush.msra.mxu0 0.0
        %694 = vmatpush.msra.mxu0 0.0
        %695 = vmatpush.msra.mxu0 0.0
        %696 = vmatpush.msra.mxu0 0.0
        %697 = vmatpush.msra.mxu0 0.0
        %698 = vmatpush.msra.mxu0 0.0
        %699 = vmatpush.msra.mxu0 0.0
        %700 = vmatpush.msra.mxu0 0.0
        %701 = vmatpush.msra.mxu0 0.0
        %702 = vmatpush.msra.mxu0 0.0
        %703 = vmatpush.msra.mxu0 0.0
        %704 = vmatpush.msra.mxu0 %v684
        %705 = vmatmul.f32.gmra.mxu0 %v681
        %v706 = vpop.f32.mrf.mxu0
        %v707 = vadd.f32 0.0, %v706
        %708 = vdwg.mxu0
        %709 = vmatpush.msra.mxu0 0.0
        %710 = vmatpush.msra.mxu0 0.0
        %711 = vmatpush.msra.mxu0 0.0
        %712 = vmatpush.msra.mxu0 0.0
        %713 = vmatpush.msra.mxu0 0.0
        %714 = vmatpush.msra.mxu0 0.0
        %715 = vmatpush.msra.mxu0 0.0
        %716 = vmatpush.msra.mxu0 0.0
        %717 = vmatpush.msra.mxu0 0.0
        %718 = vmatpush.msra.mxu0 0.0
        %719 = vmatpush.msra.mxu0 0.0
        %720 = vmatpush.msra.mxu0 0.0
        %721 = vmatpush.msra.mxu0 0.0
        %722 = vmatpush.msra.mxu0 0.0
        %723 = vmatpush.msra.mxu0 0.0
        %724 = vmatpush.msra.mxu0 %v687
        %725 = vmatmul.f32.gmra.mxu0 %v681
        %v726 = vpop.f32.mrf.mxu0
        %v727 = vadd.f32 0.0, %v726
        %728 = vdwg.mxu0
        %v729 = vadd.f32 %v650, %v707
        %v730 = vadd.f32 %v670, %v727
        %732 = vset.pattern.permute.xlu0 0
        %733 = vperm.xlu0 %732, %v564
        %v734 = vpop.permute.xlu0 %733
        %v736 = vadd.f32 %v729, %v734
        %v737 = vadd.f32 %v730, %v734
        %738 = vrot.lane.b32.xlu0 %v736, 126
        %v739 = vpop.permute.xlu0 %738
        %740 = vrot.lane.b32.xlu0 %v737, 126
        %v741 = vpop.permute.xlu0 %740
        %vm742 = vcmp.lt.s32.totalorder %v367, 126
        %v743 = vsel %vm742, %v739, %v741
        %v744 = vadd.f32 %v344, %v743
        %745 = vst [vmem:[%s343] sm:$0xf] %v744
        %s746 = sand.u32 %s188, 1
        %s747 = scalar_lea.sflag [#allocation4], %s746
        %s748 = sand.u32 %s188, 1
        %s749 = smul.addr %s748, 4
        %s750 = scalar_lea.vmem [#allocation8], %s749
        // Predicated region
        $region57: #{tpu_custom_call.1} parent=43 // pred_check
          %p751 = pneg %p198
        $region58: #{tpu_custom_call.1} parent=43 // pred_check_branch
          %753 = sbr.rel (%p751) target = $region60
        $region59: #{tpu_custom_call.1} parent=43 // pred_region
          %755 = vsyncadd %s747, 0
          %s756 = sadd.s32 %s31, %s30
          %s757 = smul.addr %s756, 4
          %s758 = scalar_lea.hbm %s6, %s757
          %s760 = sshll.u32 %s750, 4
          %s761 = int_to_ptr.vmem [resolvable:$true] %s760
          %s762 = sshll.u32 %s758, 4
          %s763 = int_to_ptr.hbm [resolvable:$true] %s762
          %765 = dma.vmem_to_hbm [thread:$0]  %s761, 64, %s763, %s747
        $region60: #{tpu_custom_call.1} parent=43 // pred_fallthru
          _
      $region44: #{tpu_custom_call.1} parent=5 // pred_fallthru
        _
      %p766 = scmp.le.s32.totalorder 2, %s21
      // Predicated region
      $region61: #{tpu_custom_call.1} parent=5 // pred_check
        %p767 = pneg %p766
      $region62: #{tpu_custom_call.1} parent=5 // pred_check_branch
        %769 = sbr.rel (%p767) target = $region64
      $region63: #{tpu_custom_call.1} parent=5 // pred_region
        %s770 = ssub.s32 %s21, 2
        // Predicated region
        $region65: #{tpu_custom_call.1} parent=63 // pred_check
          %p771 = pneg %p204
        $region66: #{tpu_custom_call.1} parent=63 // pred_check_branch
          %773 = sbr.rel (%p771) target = $region68
        $region67: #{tpu_custom_call.1} parent=63 // pred_region
          %s774 = sand.u32 %s189, 1
          %s775 = scalar_lea.sflag [#allocation4], %s774
          %s776 = sand.u32 %s189, 1
          %s777 = smul.addr %s776, 4
          %s778 = scalar_lea.vmem [#allocation8], %s777
          %780 = dma.done %s775, 64
        $region68: #{tpu_custom_call.1} parent=63 // pred_fallthru
          _
      $region64: #{tpu_custom_call.1} parent=5 // pred_fallthru
        _
    $region6: #{tpu_custom_call.1} parent=1 // loop_footer
      %s25 = sadd.s32 1, %s21
    $region7: #{tpu_custom_call.1} parent=1 // loop_footer_branch
      %20 = sbr.rel target = $region3
    $region8: #{tpu_custom_call.1} parent=1 // loop_exit
      _
    %781 = vsyncpa [#allocation3], 1
    %s782 = scalar_lea.sflag [#allocation3], 1
    %783 = vsyncpa %s782, 1
    %784 = vsyncpa [#allocation6], 1
    %s785 = scalar_lea.sflag [#allocation6], 1
    %786 = vsyncpa %s785, 1
    %787 = vsyncpa [#allocation4], 1
    %s788 = scalar_lea.sflag [#allocation4], 1
    %789 = vsyncpa %s788, 1

</llo_original>
